<compile_context>
chip_gen: v6e
topology: v6e:2x2x1
jax: 0.10.0
libtpu: 0.0.40
codegen_flags: <defaults>
</compile_context>

<pallas_src>
import numpy as np
import jax
import jax.numpy as jnp
from jax.experimental import pallas as pl
from jax.experimental.pallas import tpu as pltpu

_MXU_MIN_D = 16  # below this, a (D, V)@(V, TB) matmul wastes the MXU; use VPU/XLU.


def _round_up(n: int, m: int) -> int:
    return ((n + m - 1) // m) * m


def _make_vpu_kernel(field_slices, D: int):
    """Small-D path: per-field one-hot select (VPU) + sublane reduce (XLU), no MXU."""

    def kernel(xT_ref, table_ref, bias_ref, out_ref):
        # xT_ref   : (F, TB)  int32  local per-field indices, batch on lanes
        # table_ref: (V, D)   f32    resident, single-buffered
        # bias_ref : (D, 1)   f32    resident, single-buffered
        # out_ref  : (D, TB)  f32    batch on lanes (lane-dense stores)
        TB = out_ref.shape[-1]
        iota_cache = {}  # build each distinct (V_f, TB) iota exactly once
        rows = [jnp.zeros((1, TB), jnp.float32) for _ in range(D)]
        for f, (off, vf) in enumerate(field_slices):
            if vf not in iota_cache:
                iota_cache[vf] = jax.lax.broadcasted_iota(jnp.int32, (vf, TB), 0)
            xf = xT_ref[f:f + 1, :]                              # (1, TB)
            onehot = iota_cache[vf] == xf                        # (vf, TB) bool
            tcol = table_ref[off:off + vf, :]                    # (vf, D) static view
            for d in range(D):
                sel = jnp.where(onehot, tcol[:, d:d + 1], 0.0)   # (vf, TB) VPU select
                rows[d] = rows[d] + jnp.sum(sel, axis=0, keepdims=True)  # XLU reduce
        acc = rows[0] if D == 1 else jnp.concatenate(rows, axis=0)        # (D, TB)
        out_ref[...] = acc + bias_ref[...]

    return kernel


def _make_mxu_kernel(field_slices, D: int):
    """Large-D path: one fused (D, V) @ (V, TB) matmul over concatenated one-hots."""

    def kernel(xT_ref, tableT_ref, bias_ref, out_ref):
        # xT_ref    : (F, TB)  int32
        # tableT_ref: (D, V)   f32   resident, single-buffered
        # bias_ref  : (D, 1)   f32   resident, single-buffered
        # out_ref   : (D, TB)  f32
        TB = out_ref.shape[-1]
        iota_cache = {}
        onehots = []
        for f, (off, vf) in enumerate(field_slices):
            if vf not in iota_cache:
                iota_cache[vf] = jax.lax.broadcasted_iota(jnp.int32, (vf, TB), 0)
            xf = xT_ref[f:f + 1, :]
            onehots.append((iota_cache[vf] == xf).astype(jnp.float32))   # (vf, TB)
        onehot = onehots[0] if len(onehots) == 1 else jnp.concatenate(onehots, axis=0)
        acc = jnp.dot(tableT_ref[...], onehot, preferred_element_type=jnp.float32)
        out_ref[...] = acc + bias_ref[...]

    return kernel


def features_linear(x, field_dims, table, bias, *, block_b: int = 512):
    """x: (B, F) int32 local indices; table: (sum(field_dims), D); bias: (D,)."""
    B, F = x.shape
    V, D = table.shape
    field_dims = [int(v) for v in field_dims]
    assert len(field_dims) == F and sum(field_dims) == V
    assert bias.shape == (D,)

    offsets = np.concatenate(([0], np.cumsum(field_dims)[:-1])).astype(np.int64)
    field_slices = tuple((int(offsets[f]), field_dims[f]) for f in range(F))

    # ---- Batch tiling: big lane-aligned tiles (default 512), but keep at least
    # two grid steps when the batch allows it so the "parallel" axis can shard
    # across v7x's two TensorCores. ----
    b128 = _round_up(B, 128)
    TB = max(128, (int(block_b) // 128) * 128)
    TB = min(TB, b128)
    if b128 >= 256:
        TB = min(TB, (b128 // 2 // 128) * 128)
    B_pad = _round_up(B, TB)
    grid = (B_pad // TB,)

    xT = jnp.transpose(x.astype(jnp.int32))                      # (F, B)
    if B_pad != B:
        xT = jnp.pad(xT, ((0, 0), (0, B_pad - B)))               # pad with index 0

    use_mxu = D >= _MXU_MIN_D
    table_f32 = table.astype(jnp.float32)
    table_op = jnp.transpose(table_f32) if use_mxu else table_f32  # (D,V) or (V,D)
    bias2d = bias.astype(jnp.float32).reshape(D, 1)

    kernel = (_make_mxu_kernel if use_mxu else _make_vpu_kernel)(field_slices, D)
    resident_shape = (D, V) if use_mxu else (V, D)

    in_specs = [
        # Streamed x tile (double-buffered by default).
        pl.BlockSpec((F, TB), lambda i: (0, i)),
        # Grid-invariant table: resident, single-buffered.
        pl.BlockSpec(resident_shape, lambda i: (0, 0), pipeline_mode=pl.Buffered(1)),
        # Grid-invariant bias: resident, single-buffered.
        pl.BlockSpec((D, 1), lambda i: (0, 0), pipeline_mode=pl.Buffered(1)),
    ]
    out_specs = pl.BlockSpec((D, TB), lambda i: (0, i))

    # VMEM budget (re-derived; v7x cap is 64 MiB): single-buffered residents +
    # double-buffered streaming tiles + one-hot / temporary headroom, x2 safety.
    resident_bytes = 4 * (V * D + D)
    stream_bytes = 2 * 4 * TB * (F + D)
    scratch_bytes = 4 * TB * (V + 8 * D)
    vmem_limit = int(min(64 * 1024 * 1024,
                         max(4 * 1024 * 1024,
                             2 * (resident_bytes + stream_bytes + scratch_bytes))))

    flops = 2 * B_pad * V * D + B_pad * V
    bytes_accessed = 4 * (F * B_pad + V * D + D + D * B_pad)

    outT = pl.pallas_call(
        kernel,
        out_shape=jax.ShapeDtypeStruct((D, B_pad), jnp.float32),
        grid=grid,
        in_specs=in_specs,
        out_specs=out_specs,
        compiler_params=pltpu.CompilerParams(
            dimension_semantics=("parallel",),
            vmem_limit_bytes=vmem_limit,
        ),
        cost_estimate=pl.CostEstimate(
            flops=flops, transcendentals=0, bytes_accessed=bytes_accessed),
    )(xT, table_op, bias2d)

    # D is tiny for the FM linear term (D=1), so this transpose is effectively a
    # reshape; for D >= 128 one would emit (TB, D) tiles directly instead.
    return jnp.transpose(outT)[:B, :]                            # (B, D)


if __name__ == "__main__":
    # Module config (small, synthetic).
    field_dims = np.array([3, 4, 5, 6], dtype=np.int64)          # F = 4 fields
    output_dim = 1
    B = 1000                                                      # 2 tiles of 512 + padding
    F = len(field_dims)
    V = int(field_dims.sum())                                     # joint vocab size

    # Deterministic parameters (torch.nn.Embedding default N(0,1); bias zeros).
    key = jax.random.PRNGKey(0)
    k_table, k_x = jax.random.split(key)
    table = jax.random.normal(k_table, (V, output_dim), dtype=jnp.float32)
    bias = jnp.zeros((output_dim,), dtype=jnp.float32)

    # Deterministic integer inputs: x[:, i] in [0, field_dims[i]).
    keys = jax.random.split(k_x, F)
    x_cols = [
        jax.random.randint(keys[i], (B, 1), 0, int(field_dims[i]), dtype=jnp.int32)
        for i in range(F)
    ]
    x = jnp.concatenate(x_cols, axis=1)                           # (B, F) int32

    out = features_linear(x, field_dims, table, bias, block_b=512)
    out = jax.block_until_ready(out)

    # Pure-JAX reference check (same math as the PyTorch try-branch).
    offsets_np = np.concatenate(([0], np.cumsum(field_dims)[:-1])).astype(np.int32)
    idx = x + jnp.asarray(offsets_np)[None, :]
    ref = jnp.take(table, idx, axis=0).sum(axis=1) + bias[None, :]   # (B, D)
    np.testing.assert_allclose(np.asarray(out), np.asarray(ref), rtol=1e-5, atol=1e-5)

    print("KERNEL_OK")
</pallas_src>

<mosaic_0001>
module attributes {stable_mosaic.version = 11 : i64} {
  func.func @kernel(%arg0: i32, %arg1: memref<4x512xi32, #tpu.memory_space<vmem>>, %arg2: memref<18x1xf32, #tpu.memory_space<vmem>>, %arg3: memref<1x1xf32, #tpu.memory_space<vmem>>, %arg4: memref<1x512xf32, #tpu.memory_space<vmem>>) attributes {dimension_semantics = [#tpu.dimension_semantics<parallel>], iteration_bounds = array<i64: 2>, scalar_prefetch = 0 : i64, scratch_operands = 0 : i64, tpu.core_type = #tpu.core_type<tc>, window_params = [{transform_indices = @transform_0, window_bounds = array<i64: 4, 512>}, {pipeline_mode = #tpu.pipeline_mode<synchronous>, transform_indices = @transform_1, window_bounds = array<i64: 18, 1>}, {pipeline_mode = #tpu.pipeline_mode<synchronous>, transform_indices = @transform_2, window_bounds = array<i64: 1, 1>}, {transform_indices = @transform_3, window_bounds = array<i64: 1, 512>}]} {
    %cst = arith.constant 0.000000e+00 : f32
    %0 = vector.broadcast %cst : f32 to vector<1x512xf32>
    %1 = tpu.iota {dimensions = array<i32: 0>} : vector<3x512xi32>
    %c0 = arith.constant 0 : index
    %c0_0 = arith.constant 0 : index
    %2 = vector.load %arg1[%c0, %c0_0] : memref<4x512xi32, #tpu.memory_space<vmem>>, vector<1x512xi32>
    %3 = vector.broadcast %2 : vector<1x512xi32> to vector<3x512xi32>
    %4 = arith.cmpi eq, %1, %3 : vector<3x512xi32>
    %c0_1 = arith.constant 0 : index
    %c0_2 = arith.constant 0 : index
    %5 = vector.load %arg2[%c0_1, %c0_2] : memref<18x1xf32, #tpu.memory_space<vmem>>, vector<3x1xf32>
    %cst_3 = arith.constant 0.000000e+00 : f32
    %6 = vector.shape_cast %5 : vector<3x1xf32> to vector<3x1xf32>
    %7 = vector.broadcast %6 : vector<3x1xf32> to vector<3x512xf32>
    %8 = vector.broadcast %cst_3 : f32 to vector<3x512xf32>
    %9 = arith.select %4, %7, %8 : vector<3x512xi1>, vector<3x512xf32>
    %cst_4 = arith.constant dense<0.000000e+00> : vector<512xf32>
    %10 = vector.multi_reduction <add>, %9, %cst_4 [0] : vector<3x512xf32> to vector<512xf32>
    %11 = vector.shape_cast %10 : vector<512xf32> to vector<1x512xf32>
    %12 = arith.addf %0, %11 : vector<1x512xf32>
    %13 = tpu.iota {dimensions = array<i32: 0>} : vector<4x512xi32>
    %c1 = arith.constant 1 : index
    %c0_5 = arith.constant 0 : index
    %14 = vector.load %arg1[%c1, %c0_5] : memref<4x512xi32, #tpu.memory_space<vmem>>, vector<1x512xi32>
    %15 = vector.broadcast %14 : vector<1x512xi32> to vector<4x512xi32>
    %16 = arith.cmpi eq, %13, %15 : vector<4x512xi32>
    %c3 = arith.constant 3 : index
    %c0_6 = arith.constant 0 : index
    %17 = vector.load %arg2[%c3, %c0_6] : memref<18x1xf32, #tpu.memory_space<vmem>>, vector<4x1xf32>
    %cst_7 = arith.constant 0.000000e+00 : f32
    %18 = vector.shape_cast %17 : vector<4x1xf32> to vector<4x1xf32>
    %19 = vector.broadcast %18 : vector<4x1xf32> to vector<4x512xf32>
    %20 = vector.broadcast %cst_7 : f32 to vector<4x512xf32>
    %21 = arith.select %16, %19, %20 : vector<4x512xi1>, vector<4x512xf32>
    %cst_8 = arith.constant dense<0.000000e+00> : vector<512xf32>
    %22 = vector.multi_reduction <add>, %21, %cst_8 [0] : vector<4x512xf32> to vector<512xf32>
    %23 = vector.shape_cast %22 : vector<512xf32> to vector<1x512xf32>
    %24 = arith.addf %12, %23 : vector<1x512xf32>
    %25 = tpu.iota {dimensions = array<i32: 0>} : vector<5x512xi32>
    %c2 = arith.constant 2 : index
    %c0_9 = arith.constant 0 : index
    %26 = vector.load %arg1[%c2, %c0_9] : memref<4x512xi32, #tpu.memory_space<vmem>>, vector<1x512xi32>
    %27 = vector.broadcast %26 : vector<1x512xi32> to vector<5x512xi32>
    %28 = arith.cmpi eq, %25, %27 : vector<5x512xi32>
    %c7 = arith.constant 7 : index
    %c0_10 = arith.constant 0 : index
    %29 = vector.load %arg2[%c7, %c0_10] : memref<18x1xf32, #tpu.memory_space<vmem>>, vector<5x1xf32>
    %cst_11 = arith.constant 0.000000e+00 : f32
    %30 = vector.shape_cast %29 : vector<5x1xf32> to vector<5x1xf32>
    %31 = vector.broadcast %30 : vector<5x1xf32> to vector<5x512xf32>
    %32 = vector.broadcast %cst_11 : f32 to vector<5x512xf32>
    %33 = arith.select %28, %31, %32 : vector<5x512xi1>, vector<5x512xf32>
    %cst_12 = arith.constant dense<0.000000e+00> : vector<512xf32>
    %34 = vector.multi_reduction <add>, %33, %cst_12 [0] : vector<5x512xf32> to vector<512xf32>
    %35 = vector.shape_cast %34 : vector<512xf32> to vector<1x512xf32>
    %36 = arith.addf %24, %35 : vector<1x512xf32>
    %37 = tpu.iota {dimensions = array<i32: 0>} : vector<6x512xi32>
    %c3_13 = arith.constant 3 : index
    %c0_14 = arith.constant 0 : index
    %38 = vector.load %arg1[%c3_13, %c0_14] : memref<4x512xi32, #tpu.memory_space<vmem>>, vector<1x512xi32>
    %39 = vector.broadcast %38 : vector<1x512xi32> to vector<6x512xi32>
    %40 = arith.cmpi eq, %37, %39 : vector<6x512xi32>
    %c12 = arith.constant 12 : index
    %c0_15 = arith.constant 0 : index
    %41 = vector.load %arg2[%c12, %c0_15] : memref<18x1xf32, #tpu.memory_space<vmem>>, vector<6x1xf32>
    %cst_16 = arith.constant 0.000000e+00 : f32
    %42 = vector.shape_cast %41 : vector<6x1xf32> to vector<6x1xf32>
    %43 = vector.broadcast %42 : vector<6x1xf32> to vector<6x512xf32>
    %44 = vector.broadcast %cst_16 : f32 to vector<6x512xf32>
    %45 = arith.select %40, %43, %44 : vector<6x512xi1>, vector<6x512xf32>
    %cst_17 = arith.constant dense<0.000000e+00> : vector<512xf32>
    %46 = vector.multi_reduction <add>, %45, %cst_17 [0] : vector<6x512xf32> to vector<512xf32>
    %47 = vector.shape_cast %46 : vector<512xf32> to vector<1x512xf32>
    %48 = arith.addf %36, %47 : vector<1x512xf32>
    %c0_18 = arith.constant 0 : index
    %c0_19 = arith.constant 0 : index
    %49 = vector.load %arg3[%c0_18, %c0_19] : memref<1x1xf32, #tpu.memory_space<vmem>>, vector<1x1xf32>
    %50 = vector.broadcast %49 : vector<1x1xf32> to vector<1x512xf32>
    %51 = arith.addf %48, %50 : vector<1x512xf32>
    %c0_20 = arith.constant 0 : index
    %c0_21 = arith.constant 0 : index
    %52 = vector.load %arg4[%c0_20, %c0_21] : memref<1x512xf32, #tpu.memory_space<vmem>>, vector<1x512xf32>
    tpu.vector_store %arg4[%c0_20, %c0_21], %51 {strides = array<i32>} : memref<1x512xf32, #tpu.memory_space<vmem>>, vector<1x512xf32>,
    return
  }
  func.func @transform_0(%arg0: i32) -> (i32, i32) {
    %c0_i32 = arith.constant 0 : i32
    %c0_i32_0 = arith.constant 0 : i32
    return %c0_i32, %arg0 : i32, i32
  }
  func.func @transform_1(%arg0: i32) -> (i32, i32) {
    %c0_i32 = arith.constant 0 : i32
    %c0_i32_0 = arith.constant 0 : i32
    %c0_i32_1 = arith.constant 0 : i32
    return %c0_i32, %c0_i32_0 : i32, i32
  }
  func.func @transform_2(%arg0: i32) -> (i32, i32) {
    %c0_i32 = arith.constant 0 : i32
    %c0_i32_0 = arith.constant 0 : i32
    %c0_i32_1 = arith.constant 0 : i32
    return %c0_i32, %c0_i32_0 : i32, i32
  }
  func.func @transform_3(%arg0: i32) -> (i32, i32) {
    %c0_i32 = arith.constant 0 : i32
    %c0_i32_0 = arith.constant 0 : i32
    return %c0_i32, %arg0 : i32, i32
  }
}

</mosaic_0001>

<llo_original>
// kernel: tpu_custom_call.1
$region0: #{tpu_custom_call.1}
  #allocation0 [shape = 'u32[]', space=smem, size = 0x4, offset = 0x4, fixed_abs, tag = 'smem constant byte address 0x4 - core index']
  #allocation1 [shape = 'u32[144,128]{1,0:T(1,128)}', space=vmem, size = 0x12000, scoped, tag = 'internal scratch']
  #allocation2 [shape = 'f32[1,1]{1,0:T(1,128)S(1)}', space=vmem, size = 0x200, scoped, tag = 'scoped memory for tpu_custom_call.1']
  %s0 = inlined_call_operand.hbm [shape: s32[4,1024], index: 0, kind: input, shape index: {}]
  %s1 = inlined_call_operand.vmem [shape: f32[18,1], index: 1, kind: input, shape index: {}]
  %s2 = inlined_call_operand.<no memory space> [shape: f32[1,1], index: 2, kind: input, shape index: {}]
  %s3 = inlined_call_operand.hbm [shape: f32[1,1024], index: 3, kind: output, shape index: {}]
  %s4 = sld [smem:[#allocation0]]
  $region49: #{tpu_custom_call.1} parent=0
    _
  %s6 = ssub.s32 1, %s4
  %s7 = scalar_select 0, %s6, %s4
  %v8 = vstv %s2
  %9 = vst [vmem:[#allocation2] sm:$0x1] %v8
  $region1: #{tpu_custom_call.1} parent=0
    #allocation3 [shape = 'u8[16384]{0}', space=vmem, size = 0x4000, scoped, tag = 'input window, operand 0']
    #allocation4 [shape = 's32[2]{0}', space=sflag, size = 0x8, scoped, tag = 'scoped memory for tpu_custom_call.1']
    #allocation5 [shape = 's32[2]{0}', space=sflag, size = 0x8, scoped, tag = 'scoped memory for tpu_custom_call.1']
    #allocation6 [shape = 'u8[4096]{0}', space=vmem, size = 0x1000, scoped, tag = 'output window, operand 0']
    %10 = vsyncpa [#allocation4], 0
    %s11 = scalar_lea.sflag [#allocation4], 1
    %12 = vsyncpa %s11, 0
    %13 = vsyncpa [#allocation5], 0
    %s14 = scalar_lea.sflag [#allocation5], 1
    %15 = vsyncpa %s14, 0
    loop: start=0, step=1, limit=4
    $region2: #{tpu_custom_call.1} parent=1 // loop_pre_header
      _
    $region3: #{tpu_custom_call.1} parent=1 // loop_header
      %s17 = sphi 0, %s21
      %p18 = scmp.ge.s32.totalorder %s17, 4
      %s27 = sphi 0, %s29
      %s30 = sphi 0, %s27
      %s31 = sphi 0, %s30
      %s47 = sphi 0, %s31
      %s51 = sphi 0, %s51
      %s53 = sphi 0, %s51
      %s54 = sphi 0, %s53
      %s68 = sphi 0, %s54
      %s72 = sphi 0, %s72
      %s74 = sphi 0, %s72
      %s75 = sphi 0, %s74
      %s89 = sphi 0, %s75
      %s95 = sphi 0, %s97
      %s98 = sphi 0, %s95
      %s99 = sphi 0, %s98
      %s115 = sphi 0, %s99
    $region4: #{tpu_custom_call.1} parent=1 // loop_header_branch
      %20 = sbr.rel (%p18) target = $region8
    $region5: #{tpu_custom_call.1} parent=1 // loop_body
      %s22 = ssub.s32 %s17, 1
      %s23 = ssub.s32 %s17, 2
      %s24 = sadd.s32 %s17, 1
      %s25 = ssub.s32 %s17, %s24
      %p26 = scmp.eq.s32.totalorder %s25, 0
      %s28 = sadd.s32 %s27, 1
      %s29 = scalar_select %p26, %s27, %s28
      %p32 = pneg %p26
      %p33 = scmp.eq.s32.totalorder %s17, 1
      %p34 = por %p32, %p33
      %p35 = scmp.ne.s32.totalorder %s27, %s30
      %p36 = scmp.eq.s32.totalorder %s17, 0
      %p37 = por %p35, %p36
      %p38 = scmp.ne.s32.totalorder %s27, %s30
      %p39 = scmp.eq.s32.totalorder %s22, 1
      %p40 = por %p38, %p39
      %p41 = scmp.ne.s32.totalorder %s30, %s31
      %p42 = scmp.eq.s32.totalorder %s22, 0
      %p43 = por %p41, %p42
      %p44 = scmp.ne.s32.totalorder %s30, %s31
      %p45 = scmp.eq.s32.totalorder %s23, 1
      %p46 = por %p44, %p45
      %p48 = scmp.ne.s32.totalorder %s31, %s47
      %p49 = scmp.eq.s32.totalorder %s23, 0
      %p50 = por %p48, %p49
      %s52 = sadd.s32 %s51, 1
      %p55 = scmp.eq.s32.totalorder %s17, 1
      %p56 = scmp.ne.s32.totalorder %s51, %s53
      %p57 = scmp.eq.s32.totalorder %s17, 0
      %p58 = por %p56, %p57
      %p59 = scmp.ne.s32.totalorder %s51, %s53
      %p60 = scmp.eq.s32.totalorder %s22, 1
      %p61 = por %p59, %p60
      %p62 = scmp.ne.s32.totalorder %s53, %s54
      %p63 = scmp.eq.s32.totalorder %s22, 0
      %p64 = por %p62, %p63
      %p65 = scmp.ne.s32.totalorder %s53, %s54
      %p66 = scmp.eq.s32.totalorder %s23, 1
      %p67 = por %p65, %p66
      %p69 = scmp.ne.s32.totalorder %s54, %s68
      %p70 = scmp.eq.s32.totalorder %s23, 0
      %p71 = por %p69, %p70
      %s73 = sadd.s32 %s72, 1
      %p76 = scmp.eq.s32.totalorder %s17, 1
      %p77 = scmp.ne.s32.totalorder %s72, %s74
      %p78 = scmp.eq.s32.totalorder %s17, 0
      %p79 = por %p77, %p78
      %p80 = scmp.ne.s32.totalorder %s72, %s74
      %p81 = scmp.eq.s32.totalorder %s22, 1
      %p82 = por %p80, %p81
      %p83 = scmp.ne.s32.totalorder %s74, %s75
      %p84 = scmp.eq.s32.totalorder %s22, 0
      %p85 = por %p83, %p84
      %p86 = scmp.ne.s32.totalorder %s74, %s75
      %p87 = scmp.eq.s32.totalorder %s23, 1
      %p88 = por %p86, %p87
      %p90 = scmp.ne.s32.totalorder %s75, %s89
      %p91 = scmp.eq.s32.totalorder %s23, 0
      %p92 = por %p90, %p91
      %s93 = ssub.s32 %s17, %s24
      %p94 = scmp.eq.s32.totalorder %s93, 0
      %s96 = sadd.s32 %s95, 1
      %s97 = scalar_select %p94, %s95, %s96
      %p100 = pneg %p94
      %p101 = scmp.eq.s32.totalorder %s17, 1
      %p102 = por %p100, %p101
      %p103 = scmp.ne.s32.totalorder %s95, %s98
      %p104 = scmp.eq.s32.totalorder %s17, 0
      %p105 = por %p103, %p104
      %p106 = scmp.ne.s32.totalorder %s95, %s98
      %p107 = scmp.eq.s32.totalorder %s22, 1
      %p108 = por %p106, %p107
      %p109 = scmp.ne.s32.totalorder %s98, %s99
      %p110 = scmp.eq.s32.totalorder %s22, 0
      %p111 = por %p109, %p110
      %p112 = scmp.ne.s32.totalorder %s98, %s99
      %p113 = scmp.eq.s32.totalorder %s23, 1
      %p114 = por %p112, %p113
      %p116 = scmp.ne.s32.totalorder %s99, %s115
      %p117 = scmp.eq.s32.totalorder %s23, 0
      %p118 = por %p116, %p117
      %p119 = scmp.le.s32.totalorder 1, %s17
      %p120 = scmp.lt.s32.totalorder %s17, 3
      %p121 = pnand %p119, %p120
      %p122 = pneg %p121
      // Predicated region
      $region9: #{tpu_custom_call.1} parent=5 // pred_check
        _
      $region10: #{tpu_custom_call.1} parent=5 // pred_check_branch
        %124 = sbr.rel (%p121) target = $region12
      $region11: #{tpu_custom_call.1} parent=5 // pred_region
        %s125 = ssub.s32 %s17, 1
        // Predicated region
        $region13: #{tpu_custom_call.1} parent=11 // pred_check
          %p126 = pneg %p64
        $region14: #{tpu_custom_call.1} parent=11 // pred_check_branch
          %128 = sbr.rel (%p126) target = $region16
        $region15: #{tpu_custom_call.1} parent=11 // pred_region
          _
        $region16: #{tpu_custom_call.1} parent=11 // pred_fallthru
          _
        // Predicated region
        $region17: #{tpu_custom_call.1} parent=11 // pred_check
          %p129 = pneg %p85
        $region18: #{tpu_custom_call.1} parent=11 // pred_check_branch
          %131 = sbr.rel (%p129) target = $region20
        $region19: #{tpu_custom_call.1} parent=11 // pred_region
          _
        $region20: #{tpu_custom_call.1} parent=11 // pred_fallthru
          _
      $region12: #{tpu_custom_call.1} parent=5 // pred_fallthru
        _
      %p132 = scmp.lt.s32.totalorder %s17, 2
      // Predicated region
      $region21: #{tpu_custom_call.1} parent=5 // pred_check
        %p133 = pneg %p132
      $region22: #{tpu_custom_call.1} parent=5 // pred_check_branch
        %135 = sbr.rel (%p133) target = $region24
      $region23: #{tpu_custom_call.1} parent=5 // pred_region
        // Predicated region
        $region25: #{tpu_custom_call.1} parent=23 // pred_check
          %p136 = pneg %p37
        $region26: #{tpu_custom_call.1} parent=23 // pred_check_branch
          %138 = sbr.rel (%p136) target = $region28
        $region27: #{tpu_custom_call.1} parent=23 // pred_region
          %s139 = sand.u32 %s27, 1
          %s140 = scalar_lea.sflag [#allocation4], %s139
          %s141 = sand.u32 %s27, 1
          %s142 = smul.addr %s141, 16
          %s143 = scalar_lea.vmem [#allocation3], %s142
          %s144 = smul.u32 4, %s17
          %s146 = ssub.s32 256, 256
          %147 = vsyncadd %s140, %s146
          %s148 = smul.addr %s144, 64
          %s149 = scalar_lea.hbm %s0, %s148
          %s151 = sshll.u32 %s143, 4
          %s152 = int_to_ptr.vmem [resolvable:$true] %s151
          %154 = dma.hbm_to_vmem [thread:$0]  %s149, 256, %s152, %s140
        $region28: #{tpu_custom_call.1} parent=23 // pred_fallthru
          _
      $region24: #{tpu_custom_call.1} parent=5 // pred_fallthru
        _
      %p155 = scmp.le.s32.totalorder 1, %s17
      %p156 = scmp.lt.s32.totalorder %s17, 3
      %p157 = pnand %p155, %p156
      %p158 = pneg %p157
      // Predicated region
      $region29: #{tpu_custom_call.1} parent=5 // pred_check
        _
      $region30: #{tpu_custom_call.1} parent=5 // pred_check_branch
        %160 = sbr.rel (%p157) target = $region32
      $region31: #{tpu_custom_call.1} parent=5 // pred_region
        %s161 = ssub.s32 %s17, 1
        %s162 = sand.u32 %s30, 1
        %s163 = scalar_lea.sflag [#allocation4], %s162
        %s164 = sand.u32 %s30, 1
        %s165 = smul.addr %s164, 16
        %s166 = scalar_lea.vmem [#allocation3], %s165
        // Predicated region
        $region33: #{tpu_custom_call.1} parent=31 // pred_check
          %p167 = pneg %p43
        $region34: #{tpu_custom_call.1} parent=31 // pred_check_branch
          %169 = sbr.rel (%p167) target = $region36
        $region35: #{tpu_custom_call.1} parent=31 // pred_region
          %170 = dma.done %s163, 256
        $region36: #{tpu_custom_call.1} parent=31 // pred_fallthru
          _
        %s171 = sand.u32 %s30, 1
        %s172 = scalar_lea.sflag [#allocation4], %s171
        %s173 = sand.u32 %s30, 1
        %s174 = smul.addr %s173, 16
        %s175 = scalar_lea.vmem [#allocation3], %s174
        %p176 = pneg %p43
        %p177 = pneg %p40
        %p178 = pneg %p64
        %p179 = pneg %p61
        %p180 = pneg %p85
        %p181 = pneg %p82
        %p182 = pneg %p111
        %p183 = pneg %p108
        %s184 = sand.u32 %s98, 1
        %s185 = scalar_lea.sflag [#allocation5], %s184
        %s186 = sand.u32 %s98, 1
        %s187 = smul.addr %s186, 4
        %s188 = scalar_lea.vmem [#allocation6], %s187
        %s189 = smul.u32 4, %s22
        %s190 = smul.u32 4, %s22
        %v191 = vlaneseq
        %v192 = vshrl.u32 %v191, 7
        %v193 = vld [vmem:[%s166] ss:$4 sm:$0xf]
        %v194 = vlaneseq
        %v195 = vshrl.u32 %v194, 7
        %v196 = vsub.s32 0, %v195
        %v197 = vrot.slane %v193, %v196
        %v198 = vlaneseq
        %v199 = vshrl.u32 %v198, 7
        %v200 = vsub.s32 1, %v199
        %v201 = vrot.slane %v193, %v200
        %v202 = vlaneseq
        %v203 = vshrl.u32 %v202, 7
        %v204 = vsub.s32 2, %v203
        %v205 = vrot.slane %v193, %v204
        %v206 = vlaneseq
        %v207 = vshrl.u32 %v206, 7
        %v208 = vsub.s32 3, %v207
        %v209 = vrot.slane %v193, %v208
        %vm210 = vcmp.eq.s32.totalorder %v192, %v197
        %vm211 = vcmp.eq.s32.totalorder %v192, %v201
        %vm212 = vcmp.eq.s32.totalorder %v192, %v205
        %vm213 = vcmp.eq.s32.totalorder %v192, %v209
        %v214 = vld [vmem:[%s1] sm:$0x7]
        %216 = vset.pattern.permute.xlu0 0
        %217 = vperm.xlu0 %216, %v214
        %v218 = vpop.permute.xlu0 %217
        %v220 = vsel %vm210, %v218, 0.0
        %v221 = vsel %vm211, %v218, 0.0
        %v222 = vsel %vm212, %v218, 0.0
        %v223 = vsel %vm213, %v218, 0.0
        %vm224 = vcmask 1042432
        %v225 = vsel %vm224, %v220, 0.0
        %v226 = vrot.slane %v225, 4
        %v227 = vadd.f32 %v225, %v226
        %v228 = vrot.slane %v227, 2
        %v229 = vadd.f32 %v227, %v228
        %v230 = vrot.slane %v229, 1
        %v231 = vadd.f32 %v229, %v230
        %v232 = vsel %vm224, %v221, 0.0
        %v233 = vrot.slane %v232, 4
        %v234 = vadd.f32 %v232, %v233
        %v235 = vrot.slane %v234, 2
        %v236 = vadd.f32 %v234, %v235
        %v237 = vrot.slane %v236, 1
        %v238 = vadd.f32 %v236, %v237
        %v239 = vsel %vm224, %v222, 0.0
        %v240 = vrot.slane %v239, 4
        %v241 = vadd.f32 %v239, %v240
        %v242 = vrot.slane %v241, 2
        %v243 = vadd.f32 %v241, %v242
        %v244 = vrot.slane %v243, 1
        %v245 = vadd.f32 %v243, %v244
        %v246 = vsel %vm224, %v223, 0.0
        %v247 = vrot.slane %v246, 4
        %v248 = vadd.f32 %v246, %v247
        %v249 = vrot.slane %v248, 2
        %v250 = vadd.f32 %v248, %v249
        %v251 = vrot.slane %v250, 1
        %v252 = vadd.f32 %v250, %v251
        %v253 = vadd.f32 %v231, 0.0
        %v254 = vadd.f32 %v238, 0.0
        %v255 = vadd.f32 %v245, 0.0
        %v256 = vadd.f32 %v252, 0.0
        %s257 = scalar_lea.vmem %s166, 1 [#allocation3]
        %v258 = vld [vmem:[%s257] ss:$4 sm:$0xf]
        %v259 = vlaneseq
        %v260 = vshrl.u32 %v259, 7
        %v261 = vsub.s32 0, %v260
        %v262 = vrot.slane %v258, %v261
        %v263 = vlaneseq
        %v264 = vshrl.u32 %v263, 7
        %v265 = vsub.s32 1, %v264
        %v266 = vrot.slane %v258, %v265
        %v267 = vlaneseq
        %v268 = vshrl.u32 %v267, 7
        %v269 = vsub.s32 2, %v268
        %v270 = vrot.slane %v258, %v269
        %v271 = vlaneseq
        %v272 = vshrl.u32 %v271, 7
        %v273 = vsub.s32 3, %v272
        %v274 = vrot.slane %v258, %v273
        %vm275 = vcmp.eq.s32.totalorder %v192, %v262
        %vm276 = vcmp.eq.s32.totalorder %v192, %v266
        %vm277 = vcmp.eq.s32.totalorder %v192, %v270
        %vm278 = vcmp.eq.s32.totalorder %v192, %v274
        %v279 = vld [vmem:[%s1 + $0x3] sm:$0xf]
        %281 = vset.pattern.permute.xlu0 0
        %282 = vperm.xlu0 %281, %v279
        %v283 = vpop.permute.xlu0 %282
        %v285 = vsel %vm275, %v283, 0.0
        %v286 = vsel %vm276, %v283, 0.0
        %v287 = vsel %vm277, %v283, 0.0
        %v288 = vsel %vm278, %v283, 0.0
        %vm289 = vcmask 1043456
        %v290 = vsel %vm289, %v285, 0.0
        %v291 = vrot.slane %v290, 4
        %v292 = vadd.f32 %v290, %v291
        %v293 = vrot.slane %v292, 2
        %v294 = vadd.f32 %v292, %v293
        %v295 = vrot.slane %v294, 1
        %v296 = vadd.f32 %v294, %v295
        %v297 = vsel %vm289, %v286, 0.0
        %v298 = vrot.slane %v297, 4
        %v299 = vadd.f32 %v297, %v298
        %v300 = vrot.slane %v299, 2
        %v301 = vadd.f32 %v299, %v300
        %v302 = vrot.slane %v301, 1
        %v303 = vadd.f32 %v301, %v302
        %v304 = vsel %vm289, %v287, 0.0
        %v305 = vrot.slane %v304, 4
        %v306 = vadd.f32 %v304, %v305
        %v307 = vrot.slane %v306, 2
        %v308 = vadd.f32 %v306, %v307
        %v309 = vrot.slane %v308, 1
        %v310 = vadd.f32 %v308, %v309
        %v311 = vsel %vm289, %v288, 0.0
        %v312 = vrot.slane %v311, 4
        %v313 = vadd.f32 %v311, %v312
        %v314 = vrot.slane %v313, 2
        %v315 = vadd.f32 %v313, %v314
        %v316 = vrot.slane %v315, 1
        %v317 = vadd.f32 %v315, %v316
        %v318 = vadd.f32 %v253, %v296
        %v319 = vadd.f32 %v254, %v303
        %v320 = vadd.f32 %v255, %v310
        %v321 = vadd.f32 %v256, %v317
        %s322 = scalar_lea.vmem %s166, 2 [#allocation3]
        %v323 = vld [vmem:[%s322] ss:$4 sm:$0xf]
        %v324 = vlaneseq
        %v325 = vshrl.u32 %v324, 7
        %v326 = vsub.s32 0, %v325
        %v327 = vrot.slane %v323, %v326
        %v328 = vlaneseq
        %v329 = vshrl.u32 %v328, 7
        %v330 = vsub.s32 1, %v329
        %v331 = vrot.slane %v323, %v330
        %v332 = vlaneseq
        %v333 = vshrl.u32 %v332, 7
        %v334 = vsub.s32 2, %v333
        %v335 = vrot.slane %v323, %v334
        %v336 = vlaneseq
        %v337 = vshrl.u32 %v336, 7
        %v338 = vsub.s32 3, %v337
        %v339 = vrot.slane %v323, %v338
        %vm340 = vcmp.eq.s32.totalorder %v192, %v327
        %vm341 = vcmp.eq.s32.totalorder %v192, %v331
        %vm342 = vcmp.eq.s32.totalorder %v192, %v335
        %vm343 = vcmp.eq.s32.totalorder %v192, %v339
        %v344 = vld [vmem:[%s1 + $0x7] sm:$0x1f]
        %346 = vset.pattern.permute.xlu0 0
        %347 = vperm.xlu0 %346, %v344
        %v348 = vpop.permute.xlu0 %347
        %v350 = vsel %vm340, %v348, 0.0
        %v351 = vsel %vm341, %v348, 0.0
        %v352 = vsel %vm342, %v348, 0.0
        %v353 = vsel %vm343, %v348, 0.0
        %vm354 = vcmask 1044480
        %v355 = vsel %vm354, %v350, 0.0
        %v356 = vrot.slane %v355, 4
        %v357 = vadd.f32 %v355, %v356
        %v358 = vrot.slane %v357, 2
        %v359 = vadd.f32 %v357, %v358
        %v360 = vrot.slane %v359, 1
        %v361 = vadd.f32 %v359, %v360
        %v362 = vsel %vm354, %v351, 0.0
        %v363 = vrot.slane %v362, 4
        %v364 = vadd.f32 %v362, %v363
        %v365 = vrot.slane %v364, 2
        %v366 = vadd.f32 %v364, %v365
        %v367 = vrot.slane %v366, 1
        %v368 = vadd.f32 %v366, %v367
        %v369 = vsel %vm354, %v352, 0.0
        %v370 = vrot.slane %v369, 4
        %v371 = vadd.f32 %v369, %v370
        %v372 = vrot.slane %v371, 2
        %v373 = vadd.f32 %v371, %v372
        %v374 = vrot.slane %v373, 1
        %v375 = vadd.f32 %v373, %v374
        %v376 = vsel %vm354, %v353, 0.0
        %v377 = vrot.slane %v376, 4
        %v378 = vadd.f32 %v376, %v377
        %v379 = vrot.slane %v378, 2
        %v380 = vadd.f32 %v378, %v379
        %v381 = vrot.slane %v380, 1
        %v382 = vadd.f32 %v380, %v381
        %v383 = vadd.f32 %v318, %v361
        %v384 = vadd.f32 %v319, %v368
        %v385 = vadd.f32 %v320, %v375
        %v386 = vadd.f32 %v321, %v382
        %s387 = scalar_lea.vmem %s166, 3 [#allocation3]
        %v388 = vld [vmem:[%s387] ss:$4 sm:$0xf]
        %v389 = vlaneseq
        %v390 = vshrl.u32 %v389, 7
        %v391 = vsub.s32 0, %v390
        %v392 = vrot.slane %v388, %v391
        %v393 = vlaneseq
        %v394 = vshrl.u32 %v393, 7
        %v395 = vsub.s32 1, %v394
        %v396 = vrot.slane %v388, %v395
        %v397 = vlaneseq
        %v398 = vshrl.u32 %v397, 7
        %v399 = vsub.s32 2, %v398
        %v400 = vrot.slane %v388, %v399
        %v401 = vlaneseq
        %v402 = vshrl.u32 %v401, 7
        %v403 = vsub.s32 3, %v402
        %v404 = vrot.slane %v388, %v403
        %vm405 = vcmp.eq.s32.totalorder %v192, %v392
        %vm406 = vcmp.eq.s32.totalorder %v192, %v396
        %vm407 = vcmp.eq.s32.totalorder %v192, %v400
        %vm408 = vcmp.eq.s32.totalorder %v192, %v404
        %v409 = vld [vmem:[%s1 + $0xc] sm:$0x3f]
        %411 = vset.pattern.permute.xlu0 0
        %412 = vperm.xlu0 %411, %v409
        %v413 = vpop.permute.xlu0 %412
        %v415 = vsel %vm405, %v413, 0.0
        %v416 = vsel %vm406, %v413, 0.0
        %v417 = vsel %vm407, %v413, 0.0
        %v418 = vsel %vm408, %v413, 0.0
        %vm419 = vcmask 1045504
        %v420 = vsel %vm419, %v415, 0.0
        %v421 = vrot.slane %v420, 4
        %v422 = vadd.f32 %v420, %v421
        %v423 = vrot.slane %v422, 2
        %v424 = vadd.f32 %v422, %v423
        %v425 = vrot.slane %v424, 1
        %v426 = vadd.f32 %v424, %v425
        %v427 = vsel %vm419, %v416, 0.0
        %v428 = vrot.slane %v427, 4
        %v429 = vadd.f32 %v427, %v428
        %v430 = vrot.slane %v429, 2
        %v431 = vadd.f32 %v429, %v430
        %v432 = vrot.slane %v431, 1
        %v433 = vadd.f32 %v431, %v432
        %v434 = vsel %vm419, %v417, 0.0
        %v435 = vrot.slane %v434, 4
        %v436 = vadd.f32 %v434, %v435
        %v437 = vrot.slane %v436, 2
        %v438 = vadd.f32 %v436, %v437
        %v439 = vrot.slane %v438, 1
        %v440 = vadd.f32 %v438, %v439
        %v441 = vsel %vm419, %v418, 0.0
        %v442 = vrot.slane %v441, 4
        %v443 = vadd.f32 %v441, %v442
        %v444 = vrot.slane %v443, 2
        %v445 = vadd.f32 %v443, %v444
        %v446 = vrot.slane %v445, 1
        %v447 = vadd.f32 %v445, %v446
        %v448 = vadd.f32 %v383, %v426
        %v449 = vadd.f32 %v384, %v433
        %v450 = vadd.f32 %v385, %v440
        %v451 = vadd.f32 %v386, %v447
        %v452 = vld [vmem:[#allocation2] sm:$0x1]
        %454 = vset.pattern.permute.xlu0 0
        %455 = vperm.xlu0 %454, %v452
        %v456 = vpop.permute.xlu0 %455
        %v458 = vlaneseq
        %v459 = vshrl.u32 %v458, 7
        %v460 = vsub.s32 0, %v459
        %v461 = vrot.slane %v456, %v460
        %v462 = vadd.f32 %v448, %v461
        %v463 = vadd.f32 %v449, %v461
        %v464 = vadd.f32 %v450, %v461
        %v465 = vadd.f32 %v451, %v461
        %v470 = vcombine.low %v462, %v463
        %v471 = vcombine.low %v464, %v465
        %v473 = vunpack.c.l.s4 1966171168
        %v474 = vunpack.c.0.s8 %v473
        %v475 = vlaneseq
        %v476 = vshrl.u32 %v475, 7
        %v477 = vsub.s32 %v474, %v476
        %v478 = vrot.slane %v470, %v477
        %v480 = vunpack.c.l.s4 1966171168
        %v481 = vunpack.c.0.s8 %v480
        %v482 = vlaneseq
        %v483 = vshrl.u32 %v482, 7
        %v484 = vsub.s32 %v481, %v483
        %v485 = vrot.slane %v471, %v484
        %v486 = vcombine.low %v478, %v485
        %v488 = vunpack.c.l.s4 1966171168
        %v489 = vunpack.c.0.s8 %v488
        %v490 = vlaneseq
        %v491 = vshrl.u32 %v490, 7
        %v492 = vsub.s32 %v489, %v491
        %v493 = vrot.slane %v486, %v492
        %v495 = vlaneseq
        %vm496 = vcmp.ge.s32.totalorder %v495, 0
        %vm497 = vcmp.lt.s32.totalorder %v495, 512
        %vm498 = vmand %vm496, %vm497
        %499 = vst.msk [vmem:[%s188] sm:$0xf] %vm498, %v493
        %s500 = sand.u32 %s98, 1
        %s501 = scalar_lea.sflag [#allocation5], %s500
        %s502 = sand.u32 %s98, 1
        %s503 = smul.addr %s502, 4
        %s504 = scalar_lea.vmem [#allocation6], %s503
        // Predicated region
        $region37: #{tpu_custom_call.1} parent=31 // pred_check
          %p505 = pneg %p108
        $region38: #{tpu_custom_call.1} parent=31 // pred_check_branch
          %507 = sbr.rel (%p505) target = $region40
        $region39: #{tpu_custom_call.1} parent=31 // pred_region
          %s508 = smul.u32 4, %s22
          %s510 = ssub.s32 64, 64
          %511 = vsyncadd %s501, %s510
          %s512 = smul.addr %s508, 16
          %s513 = scalar_lea.hbm %s3, %s512
          %s515 = sshll.u32 %s504, 4
          %s516 = int_to_ptr.vmem [resolvable:$true] %s515
          %518 = dma.vmem_to_hbm [thread:$0]  %s516, 64, %s513, %s501
        $region40: #{tpu_custom_call.1} parent=31 // pred_fallthru
          _
      $region32: #{tpu_custom_call.1} parent=5 // pred_fallthru
        _
      %p519 = scmp.le.s32.totalorder 2, %s17
      // Predicated region
      $region41: #{tpu_custom_call.1} parent=5 // pred_check
        %p520 = pneg %p519
      $region42: #{tpu_custom_call.1} parent=5 // pred_check_branch
        %522 = sbr.rel (%p520) target = $region44
      $region43: #{tpu_custom_call.1} parent=5 // pred_region
        %s523 = ssub.s32 %s17, 2
        // Predicated region
        $region45: #{tpu_custom_call.1} parent=43 // pred_check
          %p524 = pneg %p114
        $region46: #{tpu_custom_call.1} parent=43 // pred_check_branch
          %526 = sbr.rel (%p524) target = $region48
        $region47: #{tpu_custom_call.1} parent=43 // pred_region
          %s527 = sand.u32 %s99, 1
          %s528 = scalar_lea.sflag [#allocation5], %s527
          %s529 = sand.u32 %s99, 1
          %s530 = smul.addr %s529, 4
          %s531 = scalar_lea.vmem [#allocation6], %s530
          %532 = dma.done %s528, 64
        $region48: #{tpu_custom_call.1} parent=43 // pred_fallthru
          _
      $region44: #{tpu_custom_call.1} parent=5 // pred_fallthru
        _
    $region6: #{tpu_custom_call.1} parent=1 // loop_footer
      %s21 = sadd.s32 1, %s17
    $region7: #{tpu_custom_call.1} parent=1 // loop_footer_branch
      %16 = sbr.rel target = $region3
    $region8: #{tpu_custom_call.1} parent=1 // loop_exit
      _
    %533 = vsyncpa [#allocation4], 1
    %s534 = scalar_lea.sflag [#allocation4], 1
    %535 = vsyncpa %s534, 1
    %536 = vsyncpa [#allocation5], 1
    %s537 = scalar_lea.sflag [#allocation5], 1
    %538 = vsyncpa %s537, 1

</llo_original>
